<compile_context>
chip_gen: v6e
topology: v6e:2x2x1
jax: 0.10.0
libtpu: 0.0.40
codegen_flags: <defaults>
</compile_context>

<pallas_src>
import jax
import jax.numpy as jnp
from jax.experimental import pallas as pl
from jax.experimental.pallas import tpu as pltpu


def _numerical_embedder_kernel(x_ref, wb_ref, out_ref):
    # x_ref  : (Bt, N)        batch tile of raw numerical features
    # wb_ref : (2, N, D)      [0] = per-feature scale, [1] = per-feature bias
    # out_ref: (Bt, N*D)      lane-dense flattened embedding slab
    x = x_ref[...]                                   # (Bt, N)
    w = wb_ref[0]                                    # (N, D)
    b = wb_ref[1]                                    # (N, D)
    y = x[:, :, None] * w[None, :, :] + b[None, :, :]   # (Bt, N, D)
    out_ref[...] = y.reshape(y.shape[0], -1).astype(out_ref.dtype)


def _choose_batch_tile(B, row_out_bytes, row_x_bytes,
                       target_out_block_bytes=4 << 20,
                       vmem_tile_budget_bytes=20 << 20):
    """Pick a batch tile by bytes, not a fixed row count."""
    # Target ~4 MiB output blocks (HBM-roofline sweet spot for streaming ops).
    bt = max(1, target_out_block_bytes // max(row_out_bytes, 1))
    # Keep double-buffered (out + x) blocks inside a conservative VMEM budget
    # that fits every generation (v7x has only 64 MiB physical VMEM).
    per_row = 2 * (row_out_bytes + row_x_bytes)
    bt = min(bt, max(1, vmem_tile_budget_bytes // max(per_row, 1)))
    # v7x megacore: ensure >= 2 parallel grid steps whenever that is possible.
    if B >= 16:
        bt = min(bt, pl.cdiv(B, 2))
    if bt >= B:
        return B
    # Block second-to-last dim must be a multiple of 8 (or equal the full dim).
    return min(max(8, (bt // 8) * 8), B)


def numerical_embedder(x, weights, biases, *, batch_tile=None, out_dtype=None):
    """x: (B, N); weights, biases: (N, D). Returns (B, N, D)."""
    B, N = x.shape
    N_w, D = weights.shape
    assert N == N_w and biases.shape == (N, D)

    if out_dtype is None:
        out_dtype = jnp.result_type(x.dtype, weights.dtype, biases.dtype)
    out_itemsize = jnp.dtype(out_dtype).itemsize

    row_out_bytes = N * D * out_itemsize
    row_x_bytes = N * x.dtype.itemsize

    if batch_tile is None:
        batch_tile = _choose_batch_tile(B, row_out_bytes, row_x_bytes)
    else:
        if batch_tile >= B:
            batch_tile = B
        elif batch_tile % 8 != 0:
            batch_tile = min(((batch_tile + 7) // 8) * 8, B)

    n_steps = pl.cdiv(B, batch_tile)

    # Fuse the two small parameter tensors into a single VMEM-resident input.
    wb = jnp.stack([weights, biases])                # (2, N, D)

    # Size the scoped VMEM limit from the actual tiles (double-buffered).
    out_block_bytes = batch_tile * row_out_bytes
    x_block_bytes = batch_tile * row_x_bytes
    wb_bytes = 2 * N * D * wb.dtype.itemsize
    vmem_need = 2 * (out_block_bytes + x_block_bytes + wb_bytes)
    vmem_limit = int(min(max(vmem_need + (4 << 20), 32 << 20), 48 << 20))

    out2d = pl.pallas_call(
        _numerical_embedder_kernel,
        out_shape=jax.ShapeDtypeStruct((B, N * D), out_dtype),
        grid=(n_steps,),
        in_specs=[
            pl.BlockSpec((batch_tile, N), lambda i: (i, 0)),     # batch tile of x
            pl.BlockSpec((2, N, D), lambda i: (0, 0, 0)),        # fused w/b, VMEM-resident
        ],
        out_specs=pl.BlockSpec((batch_tile, N * D), lambda i: (i, 0)),  # lane-dense slab
        compiler_params=pltpu.CompilerParams(
            dimension_semantics=("parallel",),
            vmem_limit_bytes=vmem_limit,
        ),
    )(x, wb)

    # Free, contiguous reshape back to the module's (B, N, D) layout.
    return out2d.reshape(B, N, D)


if __name__ == "__main__":
    key = jax.random.PRNGKey(0)
    k_x, k_w, k_b, k_x2 = jax.random.split(key, 4)

    # Small deterministic configuration matching the module:
    # batch=2 rows of num_numerical_types=4 features, embedded to dim=32.
    batch, num_numerical, dim = 2, 4, 32
    x = jax.random.normal(k_x, (batch, num_numerical), jnp.float32)
    weights = jax.random.normal(k_w, (num_numerical, dim), jnp.float32)
    biases = jax.random.normal(k_b, (num_numerical, dim), jnp.float32)

    out = jax.block_until_ready(numerical_embedder(x, weights, biases))
    ref = x[:, :, None] * weights[None] + biases[None]
    assert out.shape == (batch, num_numerical, dim)
    assert bool(jnp.all(jnp.isfinite(out)))
    assert jnp.allclose(out, ref, atol=1e-6, rtol=1e-6)

    # Tiled path: grid > 1, non-divisible batch handled by Pallas partial
    # blocks (no pad / slice copy of the output).
    x2 = jax.random.normal(k_x2, (20, num_numerical), jnp.float32)
    out2 = jax.block_until_ready(numerical_embedder(x2, weights, biases, batch_tile=8))
    ref2 = x2[:, :, None] * weights[None] + biases[None]
    assert out2.shape == (20, num_numerical, dim)
    assert jnp.allclose(out2, ref2, atol=1e-6, rtol=1e-6)

    print("KERNEL_OK")
</pallas_src>

<mosaic_0001>
module attributes {stable_mosaic.version = 11 : i64} {
  func.func @_numerical_embedder_kernel(%arg0: i32, %arg1: memref<2x4xf32, #tpu.memory_space<vmem>>, %arg2: memref<2x4x32xf32, #tpu.memory_space<vmem>>, %arg3: memref<2x128xf32, #tpu.memory_space<vmem>>) attributes {dimension_semantics = [#tpu.dimension_semantics<parallel>], iteration_bounds = array<i64: 1>, scalar_prefetch = 0 : i64, scratch_operands = 0 : i64, tpu.core_type = #tpu.core_type<tc>, window_params = [{transform_indices = @transform_0, window_bounds = array<i64: 2, 4>}, {pipeline_mode = #tpu.pipeline_mode<synchronous>, transform_indices = @transform_1, window_bounds = array<i64: 2, 4, 32>}, {transform_indices = @transform_2, window_bounds = array<i64: 2, 128>}]} {
    %c0 = arith.constant 0 : index
    %c0_0 = arith.constant 0 : index
    %0 = vector.load %arg1[%c0, %c0_0] : memref<2x4xf32, #tpu.memory_space<vmem>>, vector<2x4xf32>
    %c0_1 = arith.constant 0 : index
    %c0_2 = arith.constant 0 : index
    %c0_3 = arith.constant 0 : index
    %1 = vector.load %arg2[%c0_1, %c0_2, %c0_3] : memref<2x4x32xf32, #tpu.memory_space<vmem>>, vector<1x4x32xf32>
    %2 = vector.shape_cast %1 : vector<1x4x32xf32> to vector<4x32xf32>
    %c1 = arith.constant 1 : index
    %c0_4 = arith.constant 0 : index
    %c0_5 = arith.constant 0 : index
    %3 = vector.load %arg2[%c1, %c0_4, %c0_5] : memref<2x4x32xf32, #tpu.memory_space<vmem>>, vector<1x4x32xf32>
    %4 = vector.shape_cast %3 : vector<1x4x32xf32> to vector<4x32xf32>
    %5 = vector.shape_cast %0 : vector<2x4xf32> to vector<2x4x1xf32>
    %6 = vector.shape_cast %2 : vector<4x32xf32> to vector<1x4x32xf32>
    %7 = vector.broadcast %5 : vector<2x4x1xf32> to vector<2x4x32xf32>
    %8 = vector.broadcast %6 : vector<1x4x32xf32> to vector<2x4x32xf32>
    %9 = arith.mulf %7, %8 : vector<2x4x32xf32>
    %10 = vector.shape_cast %4 : vector<4x32xf32> to vector<1x4x32xf32>
    %11 = vector.broadcast %10 : vector<1x4x32xf32> to vector<2x4x32xf32>
    %12 = arith.addf %9, %11 : vector<2x4x32xf32>
    %13 = vector.shape_cast %12 : vector<2x4x32xf32> to vector<2x128xf32>
    %c0_6 = arith.constant 0 : index
    %c0_7 = arith.constant 0 : index
    %14 = vector.load %arg3[%c0_6, %c0_7] : memref<2x128xf32, #tpu.memory_space<vmem>>, vector<2x128xf32>
    tpu.vector_store %arg3[%c0_6, %c0_7], %13 {strides = array<i32>} : memref<2x128xf32, #tpu.memory_space<vmem>>, vector<2x128xf32>,
    return
  }
  func.func @transform_0(%arg0: i32) -> (i32, i32) {
    %c0_i32 = arith.constant 0 : i32
    %c0_i32_0 = arith.constant 0 : i32
    return %arg0, %c0_i32 : i32, i32
  }
  func.func @transform_1(%arg0: i32) -> (i32, i32, i32) {
    %c0_i32 = arith.constant 0 : i32
    %c0_i32_0 = arith.constant 0 : i32
    %c0_i32_1 = arith.constant 0 : i32
    %c0_i32_2 = arith.constant 0 : i32
    return %c0_i32, %c0_i32_0, %c0_i32_1 : i32, i32, i32
  }
  func.func @transform_2(%arg0: i32) -> (i32, i32) {
    %c0_i32 = arith.constant 0 : i32
    %c0_i32_0 = arith.constant 0 : i32
    return %arg0, %c0_i32 : i32, i32
  }
}

</mosaic_0001>

<llo_original>
// kernel: tpu_custom_call.1
$region0: #{tpu_custom_call.1}
  #allocation0 [shape = 'u32[]', space=smem, size = 0x4, offset = 0x4, fixed_abs, tag = 'smem constant byte address 0x4 - core index']
  #allocation1 [shape = 'u32[144,128]{1,0:T(1,128)}', space=vmem, size = 0x12000, scoped, tag = 'internal scratch']
  %s0 = inlined_call_operand.hbm [shape: f32[2,4], index: 0, kind: input, shape index: {}]
  %s1 = inlined_call_operand.hbm [shape: f32[2,4,32], index: 1, kind: input, shape index: {}]
  %s2 = inlined_call_operand.hbm [shape: f32[2,128], index: 2, kind: output, shape index: {}]
  %s3 = sld [smem:[#allocation0]]
  $region26: #{tpu_custom_call.1} parent=0
    _
  %s5 = ssub.s32 1, %s3
  %s6 = scalar_select 0, %s5, %s3
  $region1: #{tpu_custom_call.1} parent=0
    #allocation2 [shape = 'u8[1024]{0}', space=vmem, size = 0x400, scoped, tag = 'input window, operand 0, single buffered']
    #allocation3 [shape = 's32[1]{0}', space=sflag, size = 0x4, scoped, tag = 'scoped memory for tpu_custom_call.1']
    #allocation4 [shape = 's32[1]{0}', space=sflag, size = 0x4, scoped, tag = 'scoped memory for tpu_custom_call.1']
    #allocation5 [shape = 'u8[4096]{0}', space=vmem, size = 0x1000, scoped, tag = 'input window, operand 1, single buffered']
    #allocation6 [shape = 's32[1]{0}', space=sflag, size = 0x4, scoped, tag = 'scoped memory for tpu_custom_call.1']
    #allocation7 [shape = 'u8[1024]{0}', space=vmem, size = 0x400, scoped, tag = 'output window, operand 0, single buffered']
    %7 = vsyncpa [#allocation3], 0
    %8 = vsyncpa [#allocation6], 0
    %9 = vsyncpa [#allocation4], 0
    // Predicated region
    $region2: #{tpu_custom_call.1} parent=1 // pred_check
      _
    $region3: #{tpu_custom_call.1} parent=1 // pred_check_branch
      %11 = sbr.rel (0) target = $region5
    $region4: #{tpu_custom_call.1} parent=1 // pred_region
      %s13 = ssub.s32 32, 32
      %14 = vsyncadd [#allocation3], %s13
      %s16 = sshll.u32 [#allocation2], 4
      %s17 = int_to_ptr.vmem [resolvable:$true] %s16
      %19 = dma.hbm_to_vmem [thread:$0]  %s0, 32, %s17, [#allocation3]
    $region5: #{tpu_custom_call.1} parent=1 // pred_fallthru
      _
    // Predicated region
    $region6: #{tpu_custom_call.1} parent=1 // pred_check
      _
    $region7: #{tpu_custom_call.1} parent=1 // pred_check_branch
      %21 = sbr.rel (0) target = $region9
    $region8: #{tpu_custom_call.1} parent=1 // pred_region
      %s23 = ssub.s32 128, 128
      %24 = vsyncadd [#allocation6], %s23
      %s25 = sshll.u32 [#allocation5], 4
      %s26 = int_to_ptr.vmem [resolvable:$true] %s25
      %31 = dma.hbm_to_vmem [thread:$0]  %s1, 128, %s26, [#allocation6], 64, 64, 4
    $region9: #{tpu_custom_call.1} parent=1 // pred_fallthru
      _
    // Predicated region
    $region10: #{tpu_custom_call.1} parent=1 // pred_check
      _
    $region11: #{tpu_custom_call.1} parent=1 // pred_check_branch
      %33 = sbr.rel (0) target = $region13
    $region12: #{tpu_custom_call.1} parent=1 // pred_region
      %34 = dma.done [#allocation3], 32
    $region13: #{tpu_custom_call.1} parent=1 // pred_fallthru
      _
    // Predicated region
    $region14: #{tpu_custom_call.1} parent=1 // pred_check
      _
    $region15: #{tpu_custom_call.1} parent=1 // pred_check_branch
      %36 = sbr.rel (0) target = $region17
    $region16: #{tpu_custom_call.1} parent=1 // pred_region
      %37 = dma.done [#allocation6], 128
    $region17: #{tpu_custom_call.1} parent=1 // pred_fallthru
      _
    %v38 = vld [vmem:[#allocation2] sm:$0x3]
    %v39 = vld [vmem:[#allocation5] sm:$0xf]
    %s40 = scalar_lea.vmem [#allocation5], 4
    %v41 = vld [vmem:[%s40] sm:$0xf]
    %v42 = vlaneseq
    %v43 = vshrl.u32 %v42, 7
    %v44 = vsub.s32 0, %v43
    %v45 = vrot.slane %v38, %v44
    %47 = vbcast.lane.b32.xlu0 %v45, 256
    %v48 = vpop.permute.xlu0 %47
    %v49 = vlaneseq
    %v50 = vshrl.u32 %v49, 7
    %v51 = vsub.s32 1, %v50
    %v52 = vrot.slane %v38, %v51
    %54 = vbcast.lane.b32.xlu0 %v52, 256
    %v55 = vpop.permute.xlu0 %54
    %v56 = vmul.f32 %v48, %v39
    %v57 = vmul.f32 %v55, %v39
    %v58 = vadd.f32 %v56, %v41
    %v60 = vunpack.c.l.s4 1983009808
    %v61 = vunpack.c.0.s8 %v60
    %v62 = vlaneseq
    %v63 = vshrl.u32 %v62, 7
    %v64 = vsub.s32 %v61, %v63
    %v65 = vrot.slane %v58, %v64
    %v66 = vadd.f32 %v57, %v41
    %v68 = vunpack.c.l.s4 1983009808
    %v69 = vunpack.c.0.s8 %v68
    %v70 = vlaneseq
    %v71 = vshrl.u32 %v70, 7
    %v72 = vsub.s32 %v69, %v71
    %v73 = vrot.slane %v66, %v72
    %v74 = vcombine.low %v65, %v73
    %v75 = vcombine.high %v65, %v73
    %v77 = vunpack.c.l.s4 1934713408
    %v78 = vunpack.c.0.s8 %v77
    %v79 = vlaneseq
    %v80 = vshrl.u32 %v79, 7
    %v81 = vsub.s32 %v78, %v80
    %v82 = vrot.slane %v74, %v81
    %v84 = vunpack.c.l.s4 1934713408
    %v85 = vunpack.c.0.s8 %v84
    %v86 = vlaneseq
    %v87 = vshrl.u32 %v86, 7
    %v88 = vsub.s32 %v85, %v87
    %v89 = vrot.slane %v75, %v88
    %v90 = vcombine.high %v82, 0.0
    %v91 = vcombine.high %v89, 0.0
    %93 = vrot.lane.b32.xlu0 %v90, 32
    %v94 = vpop.permute.xlu0 %93
    %97 = vrot.lane.b32.xlu0 %v89, 64
    %v98 = vpop.permute.xlu0 %97
    %101 = vrot.lane.b32.xlu0 %v91, 96
    %v102 = vpop.permute.xlu0 %101
    %vm104 = vcmask 261120
    %v105 = vsel %vm104, %v82, %v94
    %vm106 = vcmask 523264
    %v107 = vsel %vm106, %v105, %v98
    %vm108 = vcmask 785408
    %v109 = vsel %vm108, %v107, %v102
    %110 = vst [vmem:[#allocation7] sm:$0x3] %v109
    // Predicated region
    $region18: #{tpu_custom_call.1} parent=1 // pred_check
      _
    $region19: #{tpu_custom_call.1} parent=1 // pred_check_branch
      %112 = sbr.rel (0) target = $region21
    $region20: #{tpu_custom_call.1} parent=1 // pred_region
      %s114 = ssub.s32 32, 32
      %115 = vsyncadd [#allocation4], %s114
      %s117 = sshll.u32 [#allocation7], 4
      %s118 = int_to_ptr.vmem [resolvable:$true] %s117
      %120 = dma.vmem_to_hbm [thread:$0]  %s118, 32, %s2, [#allocation4]
    $region21: #{tpu_custom_call.1} parent=1 // pred_fallthru
      _
    // Predicated region
    $region22: #{tpu_custom_call.1} parent=1 // pred_check
      _
    $region23: #{tpu_custom_call.1} parent=1 // pred_check_branch
      %122 = sbr.rel (0) target = $region25
    $region24: #{tpu_custom_call.1} parent=1 // pred_region
      %123 = dma.done [#allocation4], 32
    $region25: #{tpu_custom_call.1} parent=1 // pred_fallthru
      _
    %124 = vsyncpa [#allocation3], 1
    %125 = vsyncpa [#allocation6], 1
    %126 = vsyncpa [#allocation4], 1

</llo_original>
